<compile_context>
chip_gen: v7x
topology: tpu7x:2x2x1
jax: 0.10.0
libtpu: 0.0.40
codegen_flags: <defaults>
</compile_context>

<pallas_src>
import functools

import jax
import jax.numpy as jnp
from jax import lax
from jax.experimental import pallas as pl
from jax.experimental.pallas import tpu as pltpu


# ---------------------------------------------------------------------------
# Kernel 1: correlation + pairwise channel distance from ONE Gram accumulation
# ---------------------------------------------------------------------------
def _corr_dist_kernel(x_ref, corr_ref, dist_ref, gram_acc, sum_acc, *,
                      total_pixels):
    # x_ref: (1, C, TP) native dtype ; corr_ref/dist_ref: (1, C, C) f32
    # gram_acc: (C, C) f32 scratch ; sum_acc: (C, 1) f32 scratch
    pk = pl.program_id(1)

    @pl.when(pk == 0)
    def _init():
        gram_acc[...] = jnp.zeros_like(gram_acc)
        sum_acc[...] = jnp.zeros_like(sum_acc)

    x = x_ref[0]                                               # (C, TP)
    gram_acc[...] += lax.dot_general(x, x, (((1,), (1,)), ((), ())),
                                     preferred_element_type=jnp.float32)
    sum_acc[...] += jnp.sum(x.astype(jnp.float32), axis=1, keepdims=True)

    @pl.when(pk == pl.num_programs(1) - 1)
    def _finalize():
        c = corr_ref.shape[1]
        eye = (lax.broadcasted_iota(jnp.int32, (c, c), 0)
               == lax.broadcasted_iota(jnp.int32, (c, c), 1))
        inv_p = 1.0 / float(total_pixels)

        gr = gram_acc[...]                                     # raw Gram (C,C)
        s = sum_acc[...]                                       # (C, 1)
        ss = lax.dot_general(s, s, (((1,), (1,)), ((), ())),
                             preferred_element_type=jnp.float32)  # s_i * s_j
        dd = gr - ss * inv_p                                   # centered Gram

        # corr_ij = dd_ij / sqrt(dd_ii * dd_jj)  (std/eps factors cancel)
        dd_diag = jnp.where(eye, dd, 0.0)
        inv_col = lax.rsqrt(jnp.sum(dd_diag, axis=1, keepdims=True))   # (C,1)
        inv_row = lax.rsqrt(jnp.sum(dd_diag, axis=0, keepdims=True))   # (1,C)
        corr_ref[0] = dd * inv_col * inv_row

        # raw-channel pairwise Euclidean distance (Gram trick, clamped)
        gr_diag = jnp.where(eye, gr, 0.0)
        sq_col = jnp.sum(gr_diag, axis=1, keepdims=True)                # (C,1)
        sq_row = jnp.sum(gr_diag, axis=0, keepdims=True)                # (1,C)
        d2 = jnp.maximum(sq_col + sq_row - 2.0 * gr, 0.0)
        dist_ref[0] = jnp.sqrt(d2)


def _pick_pixel_tile(p, max_tp):
    """Largest pixel tile <= max_tp that divides p (multiple of 128 if tiled)."""
    if p <= max_tp:
        return p
    t = (max_tp // 128) * 128
    while t >= 128:
        if p % t == 0:
            return t
        t -= 128
    return p  # fallback: single full-width tile


def correlation_and_distance(x_flat, *, max_pixels_per_tile=2048):
    b, c, p = x_flat.shape
    tp = _pick_pixel_tile(p, max_pixels_per_tile)
    n_tiles = p // tp

    if n_tiles >= 3:
        # deeper input pipelining only pays off with enough pixel tiles
        x_spec = pl.BlockSpec((1, c, tp), lambda i, k: (i, 0, k),
                              pipeline_mode=pl.Buffered(3))
    else:
        x_spec = pl.BlockSpec((1, c, tp), lambda i, k: (i, 0, k))

    kernel = functools.partial(_corr_dist_kernel, total_pixels=p)
    return pl.pallas_call(
        kernel,
        out_shape=(jax.ShapeDtypeStruct((b, c, c), jnp.float32),
                   jax.ShapeDtypeStruct((b, c, c), jnp.float32)),
        grid_spec=pltpu.PrefetchScalarGridSpec(
            num_scalar_prefetch=0,
            grid=(b, n_tiles),
            in_specs=[x_spec],
            out_specs=(pl.BlockSpec((1, c, c), lambda i, k: (i, 0, 0)),
                       pl.BlockSpec((1, c, c), lambda i, k: (i, 0, 0))),
            scratch_shapes=[pltpu.VMEM((c, c), jnp.float32),
                            pltpu.VMEM((c, 1), jnp.float32)]),
        compiler_params=pltpu.CompilerParams(
            dimension_semantics=("parallel", "arbitrary")),
    )(x_flat)


# ---------------------------------------------------------------------------
# Kernel 2: index-driven DMA gather of the K medoid channel rows per batch
# ---------------------------------------------------------------------------
def _medoid_gather_kernel(idx_ref, x_hbm, out_ref, sem):
    # idx_ref: (B, K) i32 in SMEM (scalar prefetch) ; x_hbm: (B, C, P) in HBM
    # out_ref: (1, K, P) VMEM block ; sem: (K,) DMA semaphores
    bi = pl.program_id(0)
    num_k = out_ref.shape[1]
    for k in range(num_k):                       # K is small & static
        ci = idx_ref[bi, k]
        pltpu.make_async_copy(x_hbm.at[bi, pl.ds(ci, 1)],
                              out_ref.at[0, pl.ds(k, 1)],
                              sem.at[k]).start()
    for k in range(num_k):
        ci = idx_ref[bi, k]
        pltpu.make_async_copy(x_hbm.at[bi, pl.ds(ci, 1)],
                              out_ref.at[0, pl.ds(k, 1)],
                              sem.at[k]).wait()


def gather_medoid_channels(medoid_idx, x_flat):
    b, c, p = x_flat.shape
    k = medoid_idx.shape[1]
    return pl.pallas_call(
        _medoid_gather_kernel,
        out_shape=jax.ShapeDtypeStruct((b, k, p), x_flat.dtype),
        grid_spec=pltpu.PrefetchScalarGridSpec(
            num_scalar_prefetch=1,
            grid=(b,),
            in_specs=[pl.BlockSpec(memory_space=pl.ANY)],
            out_specs=pl.BlockSpec((1, k, p), lambda i, idx: (i, 0, 0)),
            scratch_shapes=[pltpu.SemaphoreType.DMA((k,))]),
        compiler_params=pltpu.CompilerParams(
            dimension_semantics=("parallel",)),
    )(medoid_idx.astype(jnp.int32), x_flat)


# ---------------------------------------------------------------------------
# Glue: deterministic k-means + medoid-index selection (tiny arrays, plain JAX)
# ---------------------------------------------------------------------------
def _kmeans_labels(points, num_clusters, iters=25):
    # TODO(synk): sklearn KMeans(n_init='auto', random_state=0, k-means++ init)
    # has no Pallas equivalent; a deterministic Lloyd iteration with first-K
    # row initialization is used instead.
    centroids = points[:num_clusters]

    def step(cents, _):
        d2 = jnp.sum((points[:, None, :] - cents[None, :, :]) ** 2, axis=-1)
        lab = jnp.argmin(d2, axis=1)
        onehot = jax.nn.one_hot(lab, num_clusters, dtype=points.dtype)
        counts = onehot.sum(axis=0)[:, None]
        new = (onehot.T @ points) / jnp.maximum(counts, 1.0)
        new = jnp.where(counts > 0, new, cents)
        return new, None

    cents, _ = lax.scan(step, centroids, None, length=iters)
    d2 = jnp.sum((points[:, None, :] - cents[None, :, :]) ** 2, axis=-1)
    return jnp.argmin(d2, axis=1).astype(jnp.int32)


def _medoid_indices(labels, dist, num_clusters):
    # labels: (C,) int32 ; dist: (C, C) f32 -> (K,) global channel index of the
    # per-cluster medoid (min mean intra-cluster distance; first index on ties,
    # matching torch.argmin over the ascending channels_in_cluster order).
    member = labels[None, :] == jnp.arange(num_clusters, dtype=labels.dtype)[:, None]
    maskf = member.astype(dist.dtype)                       # (K, C)
    size = maskf.sum(axis=1, keepdims=True)                 # (K, 1)
    sumd = maskf @ dist                                     # (K, C)
    avg = sumd / jnp.maximum(size, 1.0)
    avg = jnp.where(member, avg, jnp.inf)                   # empty cluster -> idx 0
    return jnp.argmin(avg, axis=1).astype(jnp.int32)


class ChannelClusteringPallas:
    """JAX/Pallas port of ChannelClustering (no learned parameters)."""

    def __init__(self, in_channels, num_clusters, max_pixels_per_tile=2048):
        self.in_channels = in_channels
        self.num_clusters = num_clusters
        self.max_pixels_per_tile = max_pixels_per_tile

    def __call__(self, image):
        b, c, h, w = image.shape
        x_flat = image.reshape(b, c, h * w)     # keep native dtype (no upcast)
        corr, dist = correlation_and_distance(
            x_flat, max_pixels_per_tile=self.max_pixels_per_tile)
        labels = jax.vmap(
            lambda pts: _kmeans_labels(pts, self.num_clusters))(corr)
        medoid_idx = jax.vmap(
            lambda lb, dm: _medoid_indices(lb, dm, self.num_clusters))(labels, dist)
        out_flat = gather_medoid_channels(medoid_idx, x_flat)
        return out_flat.reshape(b, self.num_clusters, h, w).astype(jnp.float32)


if __name__ == "__main__":
    key = jax.random.PRNGKey(0)
    b, c, h, w = 2, 8, 16, 16
    num_clusters = 3

    x = jax.random.normal(key, (b, c, h, w), dtype=jnp.float32)

    # small pixel tile so the test exercises the multi-tile accumulation path
    model = ChannelClusteringPallas(in_channels=c, num_clusters=num_clusters,
                                    max_pixels_per_tile=128)
    out = jax.block_until_ready(model(x))
    assert out.shape == (b, num_clusters, h, w), out.shape

    # ---- correctness checks against plain-JAX references -------------------
    x_flat = x.reshape(b, c, h * w)
    corr_k, dist_k = correlation_and_distance(x_flat, max_pixels_per_tile=128)
    corr_k = jax.block_until_ready(corr_k)

    # correlation reference (standardize-then-matmul, like the PyTorch module)
    mean = x_flat.mean(axis=2, keepdims=True)
    std = x_flat.std(axis=2, keepdims=True, ddof=1)
    xn = (x_flat - mean) / (std + 1e-8)
    g = jnp.einsum("bcp,bdp->bcd", xn, xn)
    mag = jnp.sqrt(jnp.sum(xn * xn, axis=2))
    corr_ref = g / mag[:, :, None] / mag[:, None, :]
    assert jnp.allclose(corr_k, corr_ref, atol=1e-4, rtol=1e-4)

    # pairwise channel distance reference
    diff = x_flat[:, :, None, :] - x_flat[:, None, :, :]
    dist_ref = jnp.sqrt(jnp.sum(diff * diff, axis=-1))
    assert jnp.allclose(dist_k, dist_ref, atol=1e-3, rtol=1e-3)

    # gather check: output rows are exactly the selected medoid channels
    labels = jax.vmap(lambda pts: _kmeans_labels(pts, num_clusters))(corr_k)
    med = jax.vmap(lambda lb, dm: _medoid_indices(lb, dm, num_clusters))(labels, dist_k)
    gathered = jnp.take_along_axis(x_flat, med[:, :, None].astype(jnp.int32), axis=1)
    assert jnp.allclose(out.reshape(b, num_clusters, h * w), gathered)

    print("KERNEL_OK")
</pallas_src>

<mosaic_0001>
module attributes {stable_mosaic.version = 11 : i64} {
  func.func @_corr_dist_kernel(%arg0: i32, %arg1: i32, %arg2: memref<1x8x128xf32, #tpu.memory_space<vmem>>, %arg3: memref<1x8x8xf32, #tpu.memory_space<vmem>>, %arg4: memref<1x8x8xf32, #tpu.memory_space<vmem>>, %arg5: memref<8x8xf32, #tpu.memory_space<vmem>>, %arg6: memref<8x1xf32, #tpu.memory_space<vmem>>) attributes {dimension_semantics = [#tpu.dimension_semantics<parallel>, #tpu.dimension_semantics<arbitrary>], iteration_bounds = array<i64: 2, 2>, scalar_prefetch = 0 : i64, scratch_operands = 2 : i64, tpu.core_type = #tpu.core_type<tc>, window_params = [{transform_indices = @transform_0, window_bounds = array<i64: 1, 8, 128>}, {transform_indices = @transform_1, window_bounds = array<i64: 1, 8, 8>}, {transform_indices = @transform_2, window_bounds = array<i64: 1, 8, 8>}]} {
    %c0_i32 = arith.constant 0 : i32
    %0 = arith.cmpi eq, %arg1, %c0_i32 : i32
    %1 = arith.extui %0 : i1 to i32
    %c0_i32_0 = arith.constant 0 : i32
    %2 = arith.cmpi ne, %1, %c0_i32_0 : i32
    scf.if %2 {
      %cst_13 = arith.constant 0.000000e+00 : f32
      %17 = vector.broadcast %cst_13 : f32 to vector<8x8xf32>
      %c0_14 = arith.constant 0 : index
      %c0_15 = arith.constant 0 : index
      %18 = vector.load %arg5[%c0_14, %c0_15] : memref<8x8xf32, #tpu.memory_space<vmem>>, vector<8x8xf32>
      tpu.vector_store %arg5[%c0_14, %c0_15], %17 {strides = array<i32>} : memref<8x8xf32, #tpu.memory_space<vmem>>, vector<8x8xf32>,
      %cst_16 = arith.constant 0.000000e+00 : f32
      %19 = vector.broadcast %cst_16 : f32 to vector<8x1xf32>
      %c0_17 = arith.constant 0 : index
      %c0_18 = arith.constant 0 : index
      %20 = vector.load %arg6[%c0_17, %c0_18] : memref<8x1xf32, #tpu.memory_space<vmem>>, vector<8x1xf32>
      tpu.vector_store %arg6[%c0_17, %c0_18], %19 {strides = array<i32>} : memref<8x1xf32, #tpu.memory_space<vmem>>, vector<8x1xf32>,
    } else {
    }
    %c0 = arith.constant 0 : index
    %c0_1 = arith.constant 0 : index
    %c0_2 = arith.constant 0 : index
    %3 = vector.load %arg2[%c0, %c0_1, %c0_2] : memref<1x8x128xf32, #tpu.memory_space<vmem>>, vector<1x8x128xf32>
    %4 = vector.shape_cast %3 : vector<1x8x128xf32> to vector<8x128xf32>
    %c0_3 = arith.constant 0 : index
    %c0_4 = arith.constant 0 : index
    %5 = vector.load %arg5[%c0_3, %c0_4] : memref<8x8xf32, #tpu.memory_space<vmem>>, vector<8x8xf32>
    %cst = arith.constant dense<0.000000e+00> : vector<8x8xf32>
    %6 = tpu.matmul %4, %4, %cst {dimension_numbers = #tpu.dot_dimension_numbers<[1], [1], [0], [0], [0, 0, 1, 0], [], []>} : vector<8x128xf32>, vector<8x128xf32>, vector<8x8xf32> -> vector<8x8xf32>
    %7 = arith.addf %5, %6 : vector<8x8xf32>
    %c0_5 = arith.constant 0 : index
    %c0_6 = arith.constant 0 : index
    %8 = vector.load %arg5[%c0_5, %c0_6] : memref<8x8xf32, #tpu.memory_space<vmem>>, vector<8x8xf32>
    tpu.vector_store %arg5[%c0_5, %c0_6], %7 {strides = array<i32>} : memref<8x8xf32, #tpu.memory_space<vmem>>, vector<8x8xf32>,
    %c0_7 = arith.constant 0 : index
    %c0_8 = arith.constant 0 : index
    %9 = vector.load %arg6[%c0_7, %c0_8] : memref<8x1xf32, #tpu.memory_space<vmem>>, vector<8x1xf32>
    %cst_9 = arith.constant dense<0.000000e+00> : vector<8xf32>
    %10 = vector.multi_reduction <add>, %4, %cst_9 [1] : vector<8x128xf32> to vector<8xf32>
    %11 = vector.shape_cast %10 : vector<8xf32> to vector<8x1xf32>
    %12 = arith.addf %9, %11 : vector<8x1xf32>
    %c0_10 = arith.constant 0 : index
    %c0_11 = arith.constant 0 : index
    %13 = vector.load %arg6[%c0_10, %c0_11] : memref<8x1xf32, #tpu.memory_space<vmem>>, vector<8x1xf32>
    tpu.vector_store %arg6[%c0_10, %c0_11], %12 {strides = array<i32>} : memref<8x1xf32, #tpu.memory_space<vmem>>, vector<8x1xf32>,
    %c1_i32 = arith.constant 1 : i32
    %14 = arith.cmpi eq, %arg1, %c1_i32 : i32
    %15 = arith.extui %14 : i1 to i32
    %c0_i32_12 = arith.constant 0 : i32
    %16 = arith.cmpi ne, %15, %c0_i32_12 : i32
    scf.if %16 {
      %17 = tpu.iota {dimensions = array<i32: 0>} : vector<8x8xi32>
      %18 = tpu.iota {dimensions = array<i32: 1>} : vector<8x8xi32>
      %19 = arith.cmpi eq, %17, %18 : vector<8x8xi32>
      %c0_13 = arith.constant 0 : index
      %c0_14 = arith.constant 0 : index
      %20 = vector.load %arg5[%c0_13, %c0_14] : memref<8x8xf32, #tpu.memory_space<vmem>>, vector<8x8xf32>
      %c0_15 = arith.constant 0 : index
      %c0_16 = arith.constant 0 : index
      %21 = vector.load %arg6[%c0_15, %c0_16] : memref<8x1xf32, #tpu.memory_space<vmem>>, vector<8x1xf32>
      %cst_17 = arith.constant dense<0.000000e+00> : vector<8x8xf32>
      %22 = tpu.matmul %21, %21, %cst_17 {dimension_numbers = #tpu.dot_dimension_numbers<[1], [1], [0], [0], [0, 0, 1, 0], [], []>} : vector<8x1xf32>, vector<8x1xf32>, vector<8x8xf32> -> vector<8x8xf32>
      %cst_18 = arith.constant 3.906250e-03 : f32
      %23 = vector.broadcast %cst_18 : f32 to vector<8x8xf32>
      %24 = arith.mulf %22, %23 : vector<8x8xf32>
      %25 = arith.subf %20, %24 : vector<8x8xf32>
      %cst_19 = arith.constant 0.000000e+00 : f32
      %26 = vector.broadcast %cst_19 : f32 to vector<8x8xf32>
      %27 = arith.select %19, %25, %26 : vector<8x8xi1>, vector<8x8xf32>
      %cst_20 = arith.constant dense<0.000000e+00> : vector<8xf32>
      %28 = vector.multi_reduction <add>, %27, %cst_20 [1] : vector<8x8xf32> to vector<8xf32>
      %29 = vector.shape_cast %28 : vector<8xf32> to vector<8x1xf32>
      %30 = math.rsqrt %29 : vector<8x1xf32>
      %cst_21 = arith.constant dense<0.000000e+00> : vector<8xf32>
      %31 = vector.multi_reduction <add>, %27, %cst_21 [0] : vector<8x8xf32> to vector<8xf32>
      %32 = vector.shape_cast %31 : vector<8xf32> to vector<1x8xf32>
      %33 = math.rsqrt %32 : vector<1x8xf32>
      %34 = vector.broadcast %30 : vector<8x1xf32> to vector<8x8xf32>
      %35 = arith.mulf %25, %34 : vector<8x8xf32>
      %36 = vector.broadcast %33 : vector<1x8xf32> to vector<8x8xf32>
      %37 = arith.mulf %35, %36 : vector<8x8xf32>
      %c0_22 = arith.constant 0 : index
      %c0_23 = arith.constant 0 : index
      %c0_24 = arith.constant 0 : index
      %38 = vector.load %arg3[%c0_22, %c0_23, %c0_24] : memref<1x8x8xf32, #tpu.memory_space<vmem>>, vector<1x8x8xf32>
      %39 = vector.shape_cast %38 : vector<1x8x8xf32> to vector<8x8xf32>
      %40 = vector.shape_cast %37 : vector<8x8xf32> to vector<1x8x8xf32>
      tpu.vector_store %arg3[%c0_22, %c0_23, %c0_24], %40 {strides = array<i32>} : memref<1x8x8xf32, #tpu.memory_space<vmem>>, vector<1x8x8xf32>,
      %cst_25 = arith.constant 0.000000e+00 : f32
      %41 = vector.broadcast %cst_25 : f32 to vector<8x8xf32>
      %42 = arith.select %19, %20, %41 : vector<8x8xi1>, vector<8x8xf32>
      %cst_26 = arith.constant dense<0.000000e+00> : vector<8xf32>
      %43 = vector.multi_reduction <add>, %42, %cst_26 [1] : vector<8x8xf32> to vector<8xf32>
      %44 = vector.shape_cast %43 : vector<8xf32> to vector<8x1xf32>
      %cst_27 = arith.constant dense<0.000000e+00> : vector<8xf32>
      %45 = vector.multi_reduction <add>, %42, %cst_27 [0] : vector<8x8xf32> to vector<8xf32>
      %46 = vector.shape_cast %45 : vector<8xf32> to vector<1x8xf32>
      %47 = vector.broadcast %44 : vector<8x1xf32> to vector<8x8xf32>
      %48 = vector.broadcast %46 : vector<1x8xf32> to vector<8x8xf32>
      %49 = arith.addf %47, %48 : vector<8x8xf32>
      %cst_28 = arith.constant 2.000000e+00 : f32
      %50 = vector.broadcast %cst_28 : f32 to vector<8x8xf32>
      %51 = arith.mulf %50, %20 : vector<8x8xf32>
      %52 = arith.subf %49, %51 : vector<8x8xf32>
      %cst_29 = arith.constant 0.000000e+00 : f32
      %53 = vector.broadcast %cst_29 : f32 to vector<8x8xf32>
      %54 = arith.maximumf %52, %53 : vector<8x8xf32>
      %55 = math.sqrt %54 : vector<8x8xf32>
      %c0_30 = arith.constant 0 : index
      %c0_31 = arith.constant 0 : index
      %c0_32 = arith.constant 0 : index
      %56 = vector.load %arg4[%c0_30, %c0_31, %c0_32] : memref<1x8x8xf32, #tpu.memory_space<vmem>>, vector<1x8x8xf32>
      %57 = vector.shape_cast %56 : vector<1x8x8xf32> to vector<8x8xf32>
      %58 = vector.shape_cast %55 : vector<8x8xf32> to vector<1x8x8xf32>
      tpu.vector_store %arg4[%c0_30, %c0_31, %c0_32], %58 {strides = array<i32>} : memref<1x8x8xf32, #tpu.memory_space<vmem>>, vector<1x8x8xf32>,
    } else {
    }
    return
  }
  func.func @transform_0(%arg0: i32, %arg1: i32) -> (i32, i32, i32) {
    %c0_i32 = arith.constant 0 : i32
    %c0_i32_0 = arith.constant 0 : i32
    return %arg0, %c0_i32, %arg1 : i32, i32, i32
  }
  func.func @transform_1(%arg0: i32, %arg1: i32) -> (i32, i32, i32) {
    %c0_i32 = arith.constant 0 : i32
    %c0_i32_0 = arith.constant 0 : i32
    %c0_i32_1 = arith.constant 0 : i32
    return %arg0, %c0_i32, %c0_i32_0 : i32, i32, i32
  }
  func.func @transform_2(%arg0: i32, %arg1: i32) -> (i32, i32, i32) {
    %c0_i32 = arith.constant 0 : i32
    %c0_i32_0 = arith.constant 0 : i32
    %c0_i32_1 = arith.constant 0 : i32
    return %arg0, %c0_i32, %c0_i32_0 : i32, i32, i32
  }
}

</mosaic_0001>

<llo_original>
// kernel: tpu_custom_call.1
$region0: #{tpu_custom_call.1}
  #allocation0 [shape = 'u32[]', space=smem, size = 0x4, offset = 0x4, fixed_abs, tag = 'smem constant byte address 0x4 - core index']
  #allocation1 [shape = 'u32[144,128]{1,0:T(1,128)}', space=vmem, size = 0x12000, scoped, tag = 'internal scratch']
  #allocation2 [shape = 'f32[8,8]{1,0:T(8,128)}', space=vmem, size = 0x1000, scoped, tag = 'scratch operand']
  #allocation3 [shape = 'f32[8,1]{1,0:T(8,128)}', space=vmem, size = 0x1000, scoped, tag = 'scratch operand']
  %s0 = inlined_call_operand.hbm [shape: f32[2,8,256], index: 0, kind: input, shape index: {}]
  %s1 = inlined_call_operand.hbm [shape: f32[2,8,8], index: 1, kind: output, shape index: {0}]
  %s2 = inlined_call_operand.hbm [shape: f32[2,8,8], index: 2, kind: output, shape index: {1}]
  %3 = xla_tuple %s1, %s2
  %s4 = sld [smem:[#allocation0]]
  $region57: #{tpu_custom_call.1} parent=0
    _
  %s6 = ssub.s32 1, %s4
  %s7 = scalar_select 0, %s6, %s4
  $region1: #{tpu_custom_call.1} parent=0
    #allocation4 [shape = 'u8[8192]{0}', space=vmem, size = 0x2000, scoped, tag = 'input window, operand 0']
    #allocation5 [shape = 's32[2]{0}', space=sflag, size = 0x8, scoped, tag = 'scoped memory for tpu_custom_call.1']
    #allocation6 [shape = 's32[2]{0}', space=sflag, size = 0x8, scoped, tag = 'scoped memory for tpu_custom_call.1']
    #allocation7 [shape = 'u8[8192]{0}', space=vmem, size = 0x2000, scoped, tag = 'output window, operand 0']
    #allocation8 [shape = 'u8[8192]{0}', space=vmem, size = 0x2000, scoped, tag = 'output window, operand 1']
    #allocation9 [shape = 's32[2]{0}', space=sflag, size = 0x8, scoped, tag = 'scoped memory for tpu_custom_call.1']
    %8 = vsyncpa [#allocation5], 0
    %s9 = scalar_lea.sflag [#allocation5], 1
    %10 = vsyncpa %s9, 0
    %11 = vsyncpa [#allocation6], 0
    %s12 = scalar_lea.sflag [#allocation6], 1
    %13 = vsyncpa %s12, 0
    %14 = vsyncpa [#allocation9], 0
    %s15 = scalar_lea.sflag [#allocation9], 1
    %16 = vsyncpa %s15, 0
    loop: start=0, step=1, limit=6
    $region2: #{tpu_custom_call.1} parent=1 // loop_pre_header
      _
    $region3: #{tpu_custom_call.1} parent=1 // loop_header
      %s18 = sphi 0, %s22
      %p19 = scmp.ge.s32.totalorder %s18, 6
      %s25 = sphi 0, %s37
      %s26 = sphi 0, %s33
      %s27 = sphi 0, %s25
      %s28 = sphi 0, %s26
      %s29 = sphi 0, %s27
      %s30 = sphi 0, %s28
      %s42 = sphi 0, %s44
      %s45 = sphi 0, %s42
      %s46 = sphi 0, %s45
      %s62 = sphi 0, %s46
      %s68 = sphi 0, %s70
      %s71 = sphi 0, %s68
      %s72 = sphi 0, %s71
      %s88 = sphi 0, %s72
      %s94 = sphi 0, %s96
      %s97 = sphi 0, %s94
      %s98 = sphi 0, %s97
      %s114 = sphi 0, %s98
    $region4: #{tpu_custom_call.1} parent=1 // loop_header_branch
      %21 = sbr.rel (%p19) target = $region8
    $region5: #{tpu_custom_call.1} parent=1 // loop_body
      %s23 = ssub.s32 %s18, 1
      %s24 = ssub.s32 %s18, 2
      %s31 = sadd.s32 1, %s26
      %p32 = scmp.ge.s32.totalorder %s31, 2
      %s33 = scalar_select %p32, 0, %s31
      %s34 = sadd.s32 1, %s25
      %s35 = scalar_select %p32, %s34, %s25
      %p36 = scmp.ge.s32.totalorder %s35, 2
      %s37 = scalar_select %p36, 0, %s35
      %s38 = ssub.s32 %s25, %s37
      %s39 = ssub.s32 %s26, %s33
      %s40 = sor.u32 %s38, %s39
      %p41 = scmp.eq.s32.totalorder %s40, 0
      %s43 = sadd.s32 %s42, 1
      %s44 = scalar_select %p41, %s42, %s43
      %p47 = pneg %p41
      %p48 = scmp.eq.s32.totalorder %s18, 3
      %p49 = por %p47, %p48
      %p50 = scmp.ne.s32.totalorder %s42, %s45
      %p51 = scmp.eq.s32.totalorder %s18, 0
      %p52 = por %p50, %p51
      %p53 = scmp.ne.s32.totalorder %s42, %s45
      %p54 = scmp.eq.s32.totalorder %s23, 3
      %p55 = por %p53, %p54
      %p56 = scmp.ne.s32.totalorder %s45, %s46
      %p57 = scmp.eq.s32.totalorder %s23, 0
      %p58 = por %p56, %p57
      %p59 = scmp.ne.s32.totalorder %s45, %s46
      %p60 = scmp.eq.s32.totalorder %s24, 3
      %p61 = por %p59, %p60
      %p63 = scmp.ne.s32.totalorder %s46, %s62
      %p64 = scmp.eq.s32.totalorder %s24, 0
      %p65 = por %p63, %p64
      %s66 = ssub.s32 %s25, %s37
      %p67 = scmp.eq.s32.totalorder %s66, 0
      %s69 = sadd.s32 %s68, 1
      %s70 = scalar_select %p67, %s68, %s69
      %p73 = pneg %p67
      %p74 = scmp.eq.s32.totalorder %s18, 3
      %p75 = por %p73, %p74
      %p76 = scmp.ne.s32.totalorder %s68, %s71
      %p77 = scmp.eq.s32.totalorder %s18, 0
      %p78 = por %p76, %p77
      %p79 = scmp.ne.s32.totalorder %s68, %s71
      %p80 = scmp.eq.s32.totalorder %s23, 3
      %p81 = por %p79, %p80
      %p82 = scmp.ne.s32.totalorder %s71, %s72
      %p83 = scmp.eq.s32.totalorder %s23, 0
      %p84 = por %p82, %p83
      %p85 = scmp.ne.s32.totalorder %s71, %s72
      %p86 = scmp.eq.s32.totalorder %s24, 3
      %p87 = por %p85, %p86
      %p89 = scmp.ne.s32.totalorder %s72, %s88
      %p90 = scmp.eq.s32.totalorder %s24, 0
      %p91 = por %p89, %p90
      %s92 = ssub.s32 %s25, %s37
      %p93 = scmp.eq.s32.totalorder %s92, 0
      %s95 = sadd.s32 %s94, 1
      %s96 = scalar_select %p93, %s94, %s95
      %p99 = pneg %p93
      %p100 = scmp.eq.s32.totalorder %s18, 3
      %p101 = por %p99, %p100
      %p102 = scmp.ne.s32.totalorder %s94, %s97
      %p103 = scmp.eq.s32.totalorder %s18, 0
      %p104 = por %p102, %p103
      %p105 = scmp.ne.s32.totalorder %s94, %s97
      %p106 = scmp.eq.s32.totalorder %s23, 3
      %p107 = por %p105, %p106
      %p108 = scmp.ne.s32.totalorder %s97, %s98
      %p109 = scmp.eq.s32.totalorder %s23, 0
      %p110 = por %p108, %p109
      %p111 = scmp.ne.s32.totalorder %s97, %s98
      %p112 = scmp.eq.s32.totalorder %s24, 3
      %p113 = por %p111, %p112
      %p115 = scmp.ne.s32.totalorder %s98, %s114
      %p116 = scmp.eq.s32.totalorder %s24, 0
      %p117 = por %p115, %p116
      %p118 = scmp.le.s32.totalorder 1, %s18
      %p119 = scmp.lt.s32.totalorder %s18, 5
      %p120 = pnand %p118, %p119
      %p121 = pneg %p120
      // Predicated region
      $region9: #{tpu_custom_call.1} parent=5 // pred_check
        _
      $region10: #{tpu_custom_call.1} parent=5 // pred_check_branch
        %123 = sbr.rel (%p120) target = $region12
      $region11: #{tpu_custom_call.1} parent=5 // pred_region
        %s124 = ssub.s32 %s18, 1
      $region12: #{tpu_custom_call.1} parent=5 // pred_fallthru
        _
      %p125 = scmp.lt.s32.totalorder %s18, 4
      // Predicated region
      $region13: #{tpu_custom_call.1} parent=5 // pred_check
        %p126 = pneg %p125
      $region14: #{tpu_custom_call.1} parent=5 // pred_check_branch
        %128 = sbr.rel (%p126) target = $region16
      $region15: #{tpu_custom_call.1} parent=5 // pred_region
        // Predicated region
        $region17: #{tpu_custom_call.1} parent=15 // pred_check
          %p129 = pneg %p52
        $region18: #{tpu_custom_call.1} parent=15 // pred_check_branch
          %131 = sbr.rel (%p129) target = $region20
        $region19: #{tpu_custom_call.1} parent=15 // pred_region
          %s132 = sand.u32 %s42, 1
          %s133 = scalar_lea.sflag [#allocation5], %s132
          %s134 = sand.u32 %s42, 1
          %s135 = smul.addr %s134, 8
          %s136 = scalar_lea.vmem [#allocation4], %s135
          %s138 = ssub.s32 128, 128
          %139 = vsyncadd %s133, %s138
          %s140 = smul.addr %s25, 2
          %s141 = sadd.s32 %s26, %s140
          %s142 = smul.addr %s141, 128
          %s143 = scalar_lea.hbm %s0, %s142
          %s145 = sshll.u32 %s136, 4
          %s146 = int_to_ptr.vmem [resolvable:$true] %s145
          %148 = dma.hbm_to_vmem [thread:$0]  %s143, 128, %s146, %s133
        $region20: #{tpu_custom_call.1} parent=15 // pred_fallthru
          _
      $region16: #{tpu_custom_call.1} parent=5 // pred_fallthru
        _
      %p149 = scmp.le.s32.totalorder 1, %s18
      %p150 = scmp.lt.s32.totalorder %s18, 5
      %p151 = pnand %p149, %p150
      %p152 = pneg %p151
      // Predicated region
      $region21: #{tpu_custom_call.1} parent=5 // pred_check
        _
      $region22: #{tpu_custom_call.1} parent=5 // pred_check_branch
        %154 = sbr.rel (%p151) target = $region24
      $region23: #{tpu_custom_call.1} parent=5 // pred_region
        %s155 = ssub.s32 %s18, 1
        %s156 = sand.u32 %s45, 1
        %s157 = scalar_lea.sflag [#allocation5], %s156
        %s158 = sand.u32 %s45, 1
        %s159 = smul.addr %s158, 8
        %s160 = scalar_lea.vmem [#allocation4], %s159
        // Predicated region
        $region25: #{tpu_custom_call.1} parent=23 // pred_check
          %p161 = pneg %p58
        $region26: #{tpu_custom_call.1} parent=23 // pred_check_branch
          %163 = sbr.rel (%p161) target = $region28
        $region27: #{tpu_custom_call.1} parent=23 // pred_region
          %164 = dma.done %s157, 128
        $region28: #{tpu_custom_call.1} parent=23 // pred_fallthru
          _
        %s165 = sand.u32 %s45, 1
        %s166 = scalar_lea.sflag [#allocation5], %s165
        %s167 = sand.u32 %s45, 1
        %s168 = smul.addr %s167, 8
        %s169 = scalar_lea.vmem [#allocation4], %s168
        %p170 = pneg %p58
        %p171 = pneg %p55
        %p172 = pneg %p84
        %p173 = pneg %p81
        %s174 = sand.u32 %s71, 1
        %s175 = scalar_lea.sflag [#allocation6], %s174
        %s176 = sand.u32 %s71, 1
        %s177 = smul.addr %s176, 8
        %s178 = scalar_lea.vmem [#allocation7], %s177
        %p179 = pneg %p110
        %p180 = pneg %p107
        %s181 = sand.u32 %s97, 1
        %s182 = scalar_lea.sflag [#allocation9], %s181
        %s183 = sand.u32 %s97, 1
        %s184 = smul.addr %s183, 8
        %s185 = scalar_lea.vmem [#allocation8], %s184
        %p186 = scmp.eq.s32.totalorder %s28, 0
        // Predicated region
        $region29: #{tpu_custom_call.1} parent=23 // pred_check
          %p187 = pneg %p186
        $region30: #{tpu_custom_call.1} parent=23 // pred_check_branch
          %189 = sbr.rel (%p187) target = $region32
        $region31: #{tpu_custom_call.1} parent=23 // pred_region
          %vm190 = vcmask 64512
          %191 = vst.msk [vmem:[#allocation2] sm:$0xff] %vm190, 0.0
          %vm192 = vcmask 7168
          %193 = vst.msk [vmem:[#allocation3] sm:$0xff] %vm192, 0.0
        $region32: #{tpu_custom_call.1} parent=23 // pred_fallthru
          _
        %v194 = vld [vmem:[%s160] sm:$0xff]
        %v195 = vld [vmem:[#allocation2] sm:$0xff]
        %196 = vmatprep.subr.mxu0 0.0
        %197 = vmatpush1.xpose.msra.mxu0 %v194
        %198 = vmatprep.subr.mxu0 0.0
        %199 = vmatpush1.xpose.msra.mxu0 0.0
        %200 = vmatprep.subr.mxu0 0.0
        %201 = vmatpush1.xpose.msra.mxu0 0.0
        %202 = vmatprep.subr.mxu0 0.0
        %203 = vmatpush1.xpose.msra.mxu0 0.0
        %204 = vmatprep.subr.mxu0 0.0
        %205 = vmatpush1.xpose.msra.mxu0 0.0
        %206 = vmatprep.subr.mxu0 0.0
        %207 = vmatpush1.xpose.msra.mxu0 0.0
        %208 = vmatprep.subr.mxu0 0.0
        %209 = vmatpush1.xpose.msra.mxu0 0.0
        %210 = vmatprep.subr.mxu0 0.0
        %211 = vmatpush1.xpose.msra.mxu0 0.0
        %212 = vmatprep.subr.mxu0 0.0
        %213 = vmatpush1.xpose.msra.mxu0 0.0
        %214 = vmatprep.subr.mxu0 0.0
        %215 = vmatpush1.xpose.msra.mxu0 0.0
        %216 = vmatprep.subr.mxu0 0.0
        %217 = vmatpush1.xpose.msra.mxu0 0.0
        %218 = vmatprep.subr.mxu0 0.0
        %219 = vmatpush1.xpose.msra.mxu0 0.0
        %220 = vmatprep.subr.mxu0 0.0
        %221 = vmatpush1.xpose.msra.mxu0 0.0
        %222 = vmatprep.subr.mxu0 0.0
        %223 = vmatpush1.xpose.msra.mxu0 0.0
        %224 = vmatprep.subr.mxu0 0.0
        %225 = vmatpush1.xpose.msra.mxu0 0.0
        %226 = vmatprep.subr.mxu0 0.0
        %227 = vmatpush1.xpose.msra.mxu0 0.0
        %228 = vmatprep.subr.mxu0 0.0
        %229 = vmatpush1.xpose.msra.mxu0 0.0
        %230 = vmatprep.subr.mxu0 0.0
        %231 = vmatpush1.xpose.msra.mxu0 0.0
        %232 = vmatprep.subr.mxu0 0.0
        %233 = vmatpush1.xpose.msra.mxu0 0.0
        %234 = vmatprep.subr.mxu0 0.0
        %235 = vmatpush1.xpose.msra.mxu0 0.0
        %236 = vmatprep.subr.mxu0 0.0
        %237 = vmatpush1.xpose.msra.mxu0 0.0
        %238 = vmatprep.subr.mxu0 0.0
        %239 = vmatpush1.xpose.msra.mxu0 0.0
        %240 = vmatprep.subr.mxu0 0.0
        %241 = vmatpush1.xpose.msra.mxu0 0.0
        %242 = vmatprep.subr.mxu0 0.0
        %243 = vmatpush1.xpose.msra.mxu0 0.0
        %244 = vmatprep.subr.mxu0 0.0
        %245 = vmatpush1.xpose.msra.mxu0 0.0
        %246 = vmatprep.subr.mxu0 0.0
        %247 = vmatpush1.xpose.msra.mxu0 0.0
        %248 = vmatprep.subr.mxu0 0.0
        %249 = vmatpush1.xpose.msra.mxu0 0.0
        %250 = vmatprep.subr.mxu0 0.0
        %251 = vmatpush1.xpose.msra.mxu0 0.0
        %252 = vmatprep.subr.mxu0 0.0
        %253 = vmatpush1.xpose.msra.mxu0 0.0
        %254 = vmatprep.subr.mxu0 0.0
        %255 = vmatpush1.xpose.msra.mxu0 0.0
        %256 = vmatprep.subr.mxu0 0.0
        %257 = vmatpush1.xpose.msra.mxu0 0.0
        %258 = vmatprep.subr.mxu0 0.0
        %259 = vmatpush1.xpose.msra.mxu0 0.0
        %260 = vmatprep.mubr.f32.mxu0 0.0
        %261 = vmatmul.mubr.f32.gmra.mrb[0].mxu0 %v194
        %v262 = vpop.f32.mrb[0].mxu0
        %v263 = vadd.f32 0.0, %v262
        %v264 = vpop.f32.mrb[0].mxu0
        %265 = vdwg.mxu0
        %v266 = vadd.f32 %v195, %v263
        %vm267 = vcmask 64512
        %268 = vst.msk [vmem:[#allocation2] sm:$0xff] %vm267, %v266
        %v269 = vld [vmem:[#allocation3] sm:$0xff]
        %270 = vadd.xlane.f32.xlu0 %v194
        %v271 = vpop.xlane.xlu0 %270
        %v272 = vadd.f32 %v269, %v271
        %vm273 = vcmask 7168
        %274 = vst.msk [vmem:[#allocation3] sm:$0xff] %vm273, %v272
        %p275 = scmp.eq.s32.totalorder %s28, 1
        // Predicated region
        $region33: #{tpu_custom_call.1} parent=23 // pred_check
          %p276 = pneg %p275
        $region34: #{tpu_custom_call.1} parent=23 // pred_check_branch
          %278 = sbr.rel (%p276) target = $region36
        $region35: #{tpu_custom_call.1} parent=23 // pred_region
          %v279 = vlaneseq
          %v280 = vshrl.u32 %v279, 7
          %v281 = vlaneseq
          %v282 = vand.u32 %v281, 127
          %vm283 = vcmp.eq.s32.totalorder %v280, %v282
          %v284 = vld [vmem:[#allocation2] sm:$0xff]
          %v285 = vld [vmem:[#allocation3] sm:$0xff]
          %v287 = vsel %vm273, %v285, 0
          %289 = vmatprep.subr.mxu0 0.0
          %290 = vmatpush1.xpose.msra.mxu0 %v287
          %291 = vmatprep.subr.mxu0 0.0
          %292 = vmatpush1.xpose.msra.mxu0 0.0
          %293 = vmatprep.subr.mxu0 0.0
          %294 = vmatpush1.xpose.msra.mxu0 0.0
          %295 = vmatprep.subr.mxu0 0.0
          %296 = vmatpush1.xpose.msra.mxu0 0.0
          %297 = vmatprep.subr.mxu0 0.0
          %298 = vmatpush1.xpose.msra.mxu0 0.0
          %299 = vmatprep.subr.mxu0 0.0
          %300 = vmatpush1.xpose.msra.mxu0 0.0
          %301 = vmatprep.subr.mxu0 0.0
          %302 = vmatpush1.xpose.msra.mxu0 0.0
          %303 = vmatprep.subr.mxu0 0.0
          %304 = vmatpush1.xpose.msra.mxu0 0.0
          %305 = vmatprep.subr.mxu0 0.0
          %306 = vmatpush1.xpose.msra.mxu0 0.0
          %307 = vmatprep.subr.mxu0 0.0
          %308 = vmatpush1.xpose.msra.mxu0 0.0
          %309 = vmatprep.subr.mxu0 0.0
          %310 = vmatpush1.xpose.msra.mxu0 0.0
          %311 = vmatprep.subr.mxu0 0.0
          %312 = vmatpush1.xpose.msra.mxu0 0.0
          %313 = vmatprep.subr.mxu0 0.0
          %314 = vmatpush1.xpose.msra.mxu0 0.0
          %315 = vmatprep.subr.mxu0 0.0
          %316 = vmatpush1.xpose.msra.mxu0 0.0
          %317 = vmatprep.subr.mxu0 0.0
          %318 = vmatpush1.xpose.msra.mxu0 0.0
          %319 = vmatprep.subr.mxu0 0.0
          %320 = vmatpush1.xpose.msra.mxu0 0.0
          %321 = vmatprep.subr.mxu0 0.0
          %322 = vmatpush1.xpose.msra.mxu0 0.0
          %323 = vmatprep.subr.mxu0 0.0
          %324 = vmatpush1.xpose.msra.mxu0 0.0
          %325 = vmatprep.subr.mxu0 0.0
          %326 = vmatpush1.xpose.msra.mxu0 0.0
          %327 = vmatprep.subr.mxu0 0.0
          %328 = vmatpush1.xpose.msra.mxu0 0.0
          %329 = vmatprep.subr.mxu0 0.0
          %330 = vmatpush1.xpose.msra.mxu0 0.0
          %331 = vmatprep.subr.mxu0 0.0
          %332 = vmatpush1.xpose.msra.mxu0 0.0
          %333 = vmatprep.subr.mxu0 0.0
          %334 = vmatpush1.xpose.msra.mxu0 0.0
          %335 = vmatprep.subr.mxu0 0.0
          %336 = vmatpush1.xpose.msra.mxu0 0.0
          %337 = vmatprep.subr.mxu0 0.0
          %338 = vmatpush1.xpose.msra.mxu0 0.0
          %339 = vmatprep.subr.mxu0 0.0
          %340 = vmatpush1.xpose.msra.mxu0 0.0
          %341 = vmatprep.subr.mxu0 0.0
          %342 = vmatpush1.xpose.msra.mxu0 0.0
          %343 = vmatprep.subr.mxu0 0.0
          %344 = vmatpush1.xpose.msra.mxu0 0.0
          %345 = vmatprep.subr.mxu0 0.0
          %346 = vmatpush1.xpose.msra.mxu0 0.0
          %347 = vmatprep.subr.mxu0 0.0
          %348 = vmatpush1.xpose.msra.mxu0 0.0
          %349 = vmatprep.subr.mxu0 0.0
          %350 = vmatpush1.xpose.msra.mxu0 0.0
          %351 = vmatprep.subr.mxu0 0.0
          %352 = vmatpush1.xpose.msra.mxu0 0.0
          %353 = vmatprep.mubr.f32.mxu0 0.0
          %354 = vmatmul.mubr.f32.gmra.mrb[0].mxu0 %v287
          %v355 = vpop.f32.mrb[0].mxu0
          %v356 = vadd.f32 0.0, %v355
          %v357 = vpop.f32.mrb[0].mxu0
          %358 = vdwg.mxu0
          %v359 = vmul.f32 %v356, 0.00390625
          %v360 = vsub.f32 %v284, %v359
          %v361 = vsel %vm283, %v360, 0.0
          %v362 = vsel %vm267, %v361, 0.0
          %363 = vadd.xlane.f32.xlu0 %v362
          %v364 = vpop.xlane.xlu0 %363
          %v365 = vrsqrt.pop %v364
          %v366 = vrot.slane %v362, 4
          %v367 = vadd.f32 %v362, %v366
          %v368 = vrot.slane %v367, 2
          %v369 = vadd.f32 %v367, %v368
          %v370 = vrot.slane %v369, 1
          %v371 = vadd.f32 %v369, %v370
          %v372 = vrsqrt.pop %v371
          %v373 = vmul.f32 %v360, %v365
          %v374 = vmul.f32 %v373, %v372
          %375 = vst.msk [vmem:[%s178] sm:$0xff] %vm267, %v374
          %v376 = vsel %vm283, %v284, 0.0
          %v377 = vsel %vm267, %v376, 0.0
          %378 = vadd.xlane.f32.xlu0 %v377
          %v379 = vpop.xlane.xlu0 %378
          %v380 = vrot.slane %v377, 4
          %v381 = vadd.f32 %v377, %v380
          %v382 = vrot.slane %v381, 2
          %v383 = vadd.f32 %v381, %v382
          %v384 = vrot.slane %v383, 1
          %v385 = vadd.f32 %v383, %v384
          %v386 = vadd.f32 %v379, %v385
          %v387 = vmul.f32 %v284, 2.0
          %v388 = vsub.f32 %v386, %v387
          %v389 = vmax.f32 %v388, 0.0
          %v390 = vrsqrt.pop %v389
          %v391 = vmul.f32 %v389, %v390
          %vm392 = vcmp.eq.f32.partialorder %v389, inf
          %v393 = vsel %vm392, %v389, %v391
          %vm394 = vcmp.eq.f32.partialorder %v389, 0.0
          %v395 = vand.u32 %v389, 2147483648
          %v396 = vsel %vm394, %v395, %v393
          %397 = vst.msk [vmem:[%s185] sm:$0xff] %vm267, %v396
        $region36: #{tpu_custom_call.1} parent=23 // pred_fallthru
          _
        %s398 = sand.u32 %s71, 1
        %s399 = scalar_lea.sflag [#allocation6], %s398
        %s400 = sand.u32 %s71, 1
        %s401 = smul.addr %s400, 8
        %s402 = scalar_lea.vmem [#allocation7], %s401
        %s403 = sand.u32 %s97, 1
        %s404 = scalar_lea.sflag [#allocation9], %s403
        %s405 = sand.u32 %s97, 1
        %s406 = smul.addr %s405, 8
        %s407 = scalar_lea.vmem [#allocation8], %s406
        // Predicated region
        $region37: #{tpu_custom_call.1} parent=23 // pred_check
          %p408 = pneg %p81
        $region38: #{tpu_custom_call.1} parent=23 // pred_check_branch
          %410 = sbr.rel (%p408) target = $region40
        $region39: #{tpu_custom_call.1} parent=23 // pred_region
          %s412 = ssub.s32 128, 128
          %413 = vsyncadd %s399, %s412
          %s414 = smul.addr %s27, 128
          %s415 = scalar_lea.hbm %s1, %s414
          %s417 = sshll.u32 %s402, 4
          %s418 = int_to_ptr.vmem [resolvable:$true] %s417
          %420 = dma.vmem_to_hbm [thread:$0]  %s418, 128, %s415, %s399
        $region40: #{tpu_custom_call.1} parent=23 // pred_fallthru
          _
        // Predicated region
        $region41: #{tpu_custom_call.1} parent=23 // pred_check
          %p421 = pneg %p107
        $region42: #{tpu_custom_call.1} parent=23 // pred_check_branch
          %423 = sbr.rel (%p421) target = $region44
        $region43: #{tpu_custom_call.1} parent=23 // pred_region
          %s425 = ssub.s32 128, 128
          %426 = vsyncadd %s404, %s425
          %s427 = smul.addr %s27, 128
          %s428 = scalar_lea.hbm %s2, %s427
          %s430 = sshll.u32 %s407, 4
          %s431 = int_to_ptr.vmem [resolvable:$true] %s430
          %433 = dma.vmem_to_hbm [thread:$0]  %s431, 128, %s428, %s404
        $region44: #{tpu_custom_call.1} parent=23 // pred_fallthru
          _
      $region24: #{tpu_custom_call.1} parent=5 // pred_fallthru
        _
      %p434 = scmp.le.s32.totalorder 2, %s18
      // Predicated region
      $region45: #{tpu_custom_call.1} parent=5 // pred_check
        %p435 = pneg %p434
      $region46: #{tpu_custom_call.1} parent=5 // pred_check_branch
        %437 = sbr.rel (%p435) target = $region48
      $region47: #{tpu_custom_call.1} parent=5 // pred_region
        %s438 = ssub.s32 %s18, 2
        // Predicated region
        $region49: #{tpu_custom_call.1} parent=47 // pred_check
          %p439 = pneg %p87
        $region50: #{tpu_custom_call.1} parent=47 // pred_check_branch
          %441 = sbr.rel (%p439) target = $region52
        $region51: #{tpu_custom_call.1} parent=47 // pred_region
          %s442 = sand.u32 %s72, 1
          %s443 = scalar_lea.sflag [#allocation6], %s442
          %s444 = sand.u32 %s72, 1
          %s445 = smul.addr %s444, 8
          %s446 = scalar_lea.vmem [#allocation7], %s445
          %447 = dma.done %s443, 128
        $region52: #{tpu_custom_call.1} parent=47 // pred_fallthru
          _
        // Predicated region
        $region53: #{tpu_custom_call.1} parent=47 // pred_check
          %p448 = pneg %p113
        $region54: #{tpu_custom_call.1} parent=47 // pred_check_branch
          %450 = sbr.rel (%p448) target = $region56
        $region55: #{tpu_custom_call.1} parent=47 // pred_region
          %s451 = sand.u32 %s98, 1
          %s452 = scalar_lea.sflag [#allocation9], %s451
          %s453 = sand.u32 %s98, 1
          %s454 = smul.addr %s453, 8
          %s455 = scalar_lea.vmem [#allocation8], %s454
          %456 = dma.done %s452, 128
        $region56: #{tpu_custom_call.1} parent=47 // pred_fallthru
          _
      $region48: #{tpu_custom_call.1} parent=5 // pred_fallthru
        _
    $region6: #{tpu_custom_call.1} parent=1 // loop_footer
      %s22 = sadd.s32 1, %s18
    $region7: #{tpu_custom_call.1} parent=1 // loop_footer_branch
      %17 = sbr.rel target = $region3
    $region8: #{tpu_custom_call.1} parent=1 // loop_exit
      _
    %457 = vsyncpa [#allocation5], 1
    %s458 = scalar_lea.sflag [#allocation5], 1
    %459 = vsyncpa %s458, 1
    %460 = vsyncpa [#allocation6], 1
    %s461 = scalar_lea.sflag [#allocation6], 1
    %462 = vsyncpa %s461, 1
    %463 = vsyncpa [#allocation9], 1
    %s464 = scalar_lea.sflag [#allocation9], 1
    %465 = vsyncpa %s464, 1

</llo_original>
